<compile_context>
chip_gen: v6e
topology: v6e:2x2x1
jax: 0.10.0
libtpu: 0.0.40
codegen_flags: <defaults>
</compile_context>

<pallas_src>
import functools

import jax
import jax.numpy as jnp
from jax.experimental import pallas as pl
from jax.experimental.pallas import tpu as pltpu

num_class = 4
num_organ = num_class - 1
_LANES = 128


def _dice_sums_kernel(pred_ref, tgt_ref, out_ref, acc_ref, *,
                      has_softmax, needs_mask, n_class):
    # pred_ref: (1, C, R, 128) logits (native dtype; cast to f32 after DMA)
    # tgt_ref : (1, R, 128)    integer labels (-1 marks padded voxels)
    # out_ref : (1, 3, n_org)  [0]=sum(P*G) [1]=sum(P) [2]=sum(G) per organ
    # acc_ref : (3, n_org, 128) lane-dense per-lane partial accumulator
    t_idx = pl.program_id(2)

    @pl.when(t_idx == 0)
    def _():
        acc_ref[...] = jnp.zeros_like(acc_ref)

    x = pred_ref[0].astype(jnp.float32)            # (C, R, 128)
    t = tgt_ref[0].astype(jnp.int32)               # (R, 128)

    if has_softmax:
        m = jnp.max(x, axis=0, keepdims=True)      # (1, R, 128)
        e = jnp.exp(x - m)
        denom = jnp.sum(e, axis=0, keepdims=True)  # (1, R, 128)
        inv = pl.reciprocal(denom)                 # exact; keeps 1e-5 tolerance
        if needs_mask:
            # Fold padded-voxel mask into the single (1,R,128) reciprocal
            # instead of masking each of the class slabs separately.
            inv = inv * (t >= 0).astype(jnp.float32)
        p = e * inv
    else:
        # Padded voxels already carry zero "probabilities" (wrapper zero-pads),
        # so no masking is needed on this path.
        p = x

    # Only organ classes 1..C-1 feed the loss (class 0 is softmax-only).
    pg_rows, sp_rows, sg_rows = [], [], []
    for c in range(1, n_class):                    # static, unrolled (3 iters)
        p_c = p[c]                                 # (R, 128)
        is_c = (t == c)
        pg_rows.append(jnp.sum(jnp.where(is_c, p_c, 0.0),
                               axis=0, keepdims=True))            # (1, 128)
        sp_rows.append(jnp.sum(p_c, axis=0, keepdims=True))
        sg_rows.append(jnp.sum(is_c.astype(jnp.float32),
                               axis=0, keepdims=True))

    update = jnp.stack([jnp.concatenate(pg_rows, axis=0),
                        jnp.concatenate(sp_rows, axis=0),
                        jnp.concatenate(sg_rows, axis=0)], axis=0)  # (3,n_org,128)
    acc_ref[...] += update

    @pl.when(t_idx == pl.num_programs(2) - 1)
    def _():
        # Single cross-lane reduce + tiny output store per (batch, split).
        out_ref[0] = jnp.sum(acc_ref[...], axis=-1)   # (3, n_org)


@functools.partial(jax.jit, static_argnames=("has_softmax", "max_tile_rows"))
def dice_loss_focal(pred, target, has_softmax=True, max_tile_rows=1024):
    """pred: (B, C, D, H, W) float logits; target: (B, D, H, W) int labels."""
    B, C, D, H, W = pred.shape
    assert C == num_class
    S = D * H * W

    # Lane-dense tiling: rows of 128 voxels; tile = tile_rows x 128 voxels.
    s_rows = pl.cdiv(S, _LANES)
    tile_rows = max(8, min(max_tile_rows, ((s_rows + 7) // 8) * 8))
    num_tiles = pl.cdiv(s_rows, tile_rows)

    # Megacore: if the batch alone cannot be split evenly across two cores,
    # split the spatial tiles into two parallel chunks (v7x); on 1-TC chips
    # this just adds one extra tiny output block per batch element.
    num_splits = 2 if (B % 2 == 1 and num_tiles >= 2) else 1
    tiles_per_split = pl.cdiv(num_tiles, num_splits)
    rows_pad = num_splits * tiles_per_split * tile_rows
    s_pad = rows_pad * _LANES
    pad = s_pad - S
    needs_mask = (pad != 0) and has_softmax

    pred_r = pred.reshape(B, C, S)                    # native dtype, no astype
    tgt_r = target.reshape(B, S)
    if not jnp.issubdtype(tgt_r.dtype, jnp.signedinteger):
        tgt_r = tgt_r.astype(jnp.int32)
    if pad:
        pred_r = jnp.pad(pred_r, ((0, 0), (0, 0), (0, pad)))
        tgt_r = jnp.pad(tgt_r, ((0, 0), (0, pad)), constant_values=-1)
    pred_r = pred_r.reshape(B, C, rows_pad, _LANES)
    tgt_r = tgt_r.reshape(B, rows_pad, _LANES)

    kernel = functools.partial(_dice_sums_kernel, has_softmax=has_softmax,
                               needs_mask=needs_mask, n_class=C)

    partial_sums = pl.pallas_call(
        kernel,
        out_shape=jax.ShapeDtypeStruct((B * num_splits, 3, num_organ),
                                       jnp.float32),
        grid_spec=pltpu.PrefetchScalarGridSpec(
            num_scalar_prefetch=0,
            grid=(B, num_splits, tiles_per_split),
            in_specs=[
                pl.BlockSpec((1, C, tile_rows, _LANES),
                             lambda b, s, t: (b, 0, s * tiles_per_split + t, 0)),
                pl.BlockSpec((1, tile_rows, _LANES),
                             lambda b, s, t: (b, s * tiles_per_split + t, 0)),
            ],
            out_specs=pl.BlockSpec((1, 3, num_organ),
                                   lambda b, s, t: (b * num_splits + s, 0, 0)),
            scratch_shapes=[pltpu.VMEM((3, num_organ, _LANES), jnp.float32)],
        ),
        compiler_params=pltpu.CompilerParams(
            dimension_semantics=("parallel", "parallel", "arbitrary"),
            vmem_limit_bytes=32 * 1024 * 1024),
    )(pred_r, tgt_r)

    # Final scalar glue (mirrors the PyTorch reference exactly).
    sums = partial_sums.reshape(B, num_splits, 3, num_organ).sum(axis=1)
    pg = sums[:, 0, :]       # sum(P*G)      (B, num_organ)
    sum_p = sums[:, 1, :]    # sum(P)
    sum_g = sums[:, 2, :]    # sum(G)
    mul_pg = sum_g - pg      # sum((1-P)*G)
    mulp_g = sum_p - pg      # sum(P*(1-G))
    dice = jnp.sum((pg + 1.0) /
                   (pg + 0.8 * mul_pg + 0.2 * mulp_g + 1.0), axis=1)  # (B,)
    pt_1 = jnp.mean(dice)
    gamma = 0.75
    return jnp.power(2.0 - pt_1, gamma)


def _reference_loss(pred, target, has_softmax=True):
    p = pred.astype(jnp.float32)
    if has_softmax:
        p = jax.nn.softmax(p, axis=1)
    oh = jax.nn.one_hot(target, num_class, axis=1, dtype=jnp.float32)
    dice = 0.0
    for c in range(1, num_class):
        P = p[:, c]
        G = oh[:, c]
        mulPG = (P * G).sum(axis=(1, 2, 3))
        mul_PG = ((1.0 - P) * G).sum(axis=(1, 2, 3))
        mulP_G = (P * (1.0 - G)).sum(axis=(1, 2, 3))
        dice = dice + (mulPG + 1.0) / (mulPG + 0.8 * mul_PG + 0.2 * mulP_G + 1.0)
    pt_1 = dice.mean()
    return (2.0 - pt_1) ** 0.75


if __name__ == "__main__":
    key = jax.random.PRNGKey(0)
    k_pred, k_tgt = jax.random.split(key)

    # Case 1: 128-divisible spatial volume, even batch (softmax path).
    B, C, D, H, W = 2, num_class, 8, 16, 16
    pred = jax.random.normal(k_pred, (B, C, D, H, W), dtype=jnp.float32)
    target = jax.random.randint(k_tgt, (B, D, H, W), 0, num_class,
                                dtype=jnp.int32)
    loss = jax.block_until_ready(dice_loss_focal(pred, target))
    ref = _reference_loss(pred, target)
    assert jnp.allclose(loss, ref, rtol=1e-5, atol=1e-5), (loss, ref)

    # Case 1b: no-softmax path (inputs treated as probabilities).
    loss_ns = jax.block_until_ready(dice_loss_focal(pred, target,
                                                    has_softmax=False))
    ref_ns = _reference_loss(pred, target, has_softmax=False)
    assert jnp.allclose(loss_ns, ref_ns, rtol=1e-5, atol=1e-5), (loss_ns, ref_ns)

    # Case 2: non-128-divisible spatial volume (padding + mask path).
    D2, H2, W2 = 5, 7, 11
    pred2 = jax.random.normal(k_pred, (B, C, D2, H2, W2), dtype=jnp.float32)
    target2 = jax.random.randint(k_tgt, (B, D2, H2, W2), 0, num_class,
                                 dtype=jnp.int32)
    loss2 = jax.block_until_ready(dice_loss_focal(pred2, target2))
    ref2 = _reference_loss(pred2, target2)
    assert jnp.allclose(loss2, ref2, rtol=1e-5, atol=1e-5), (loss2, ref2)

    # Case 3: odd batch with multiple tiles -> exercises the megacore split
    # (forced small tile to keep shapes tiny).
    B3 = 1
    pred3 = jax.random.normal(k_pred, (B3, C, 8, 16, 16), dtype=jnp.float32)
    target3 = jax.random.randint(k_tgt, (B3, 8, 16, 16), 0, num_class,
                                 dtype=jnp.int32)
    loss3 = jax.block_until_ready(dice_loss_focal(pred3, target3,
                                                  max_tile_rows=8))
    ref3 = _reference_loss(pred3, target3)
    assert jnp.allclose(loss3, ref3, rtol=1e-5, atol=1e-5), (loss3, ref3)

    print("KERNEL_OK")
</pallas_src>

<mosaic_0001>
module attributes {stable_mosaic.version = 11 : i64} {
  func.func @_dice_sums_kernel(%arg0: i32, %arg1: i32, %arg2: i32, %arg3: memref<1x4x16x128xf32, #tpu.memory_space<vmem>>, %arg4: memref<1x16x128xi32, #tpu.memory_space<vmem>>, %arg5: memref<1x3x3xf32, #tpu.memory_space<vmem>>, %arg6: memref<3x3x128xf32, #tpu.memory_space<vmem>>) attributes {dimension_semantics = [#tpu.dimension_semantics<parallel>, #tpu.dimension_semantics<parallel>, #tpu.dimension_semantics<arbitrary>], iteration_bounds = array<i64: 2, 1, 1>, scalar_prefetch = 0 : i64, scratch_operands = 1 : i64, tpu.core_type = #tpu.core_type<tc>, window_params = [{transform_indices = @transform_0, window_bounds = array<i64: 1, 4, 16, 128>}, {transform_indices = @transform_1, window_bounds = array<i64: 1, 16, 128>}, {transform_indices = @transform_2, window_bounds = array<i64: 1, 3, 3>}]} {
    %c0_i32 = arith.constant 0 : i32
    %0 = arith.cmpi eq, %arg2, %c0_i32 : i32
    %1 = arith.extui %0 : i1 to i32
    %c0_i32_0 = arith.constant 0 : i32
    %2 = arith.cmpi ne, %1, %c0_i32_0 : i32
    scf.if %2 {
      %cst_28 = arith.constant 0.000000e+00 : f32
      %72 = vector.broadcast %cst_28 : f32 to vector<3x3x128xf32>
      %c0_29 = arith.constant 0 : index
      %c0_30 = arith.constant 0 : index
      %c0_31 = arith.constant 0 : index
      %73 = vector.load %arg6[%c0_29, %c0_30, %c0_31] : memref<3x3x128xf32, #tpu.memory_space<vmem>>, vector<3x3x128xf32>
      tpu.vector_store %arg6[%c0_29, %c0_30, %c0_31], %72 {strides = array<i32>} : memref<3x3x128xf32, #tpu.memory_space<vmem>>, vector<3x3x128xf32>,
    } else {
    }
    %c0 = arith.constant 0 : index
    %c0_1 = arith.constant 0 : index
    %c0_2 = arith.constant 0 : index
    %c0_3 = arith.constant 0 : index
    %3 = vector.load %arg3[%c0, %c0_1, %c0_2, %c0_3] : memref<1x4x16x128xf32, #tpu.memory_space<vmem>>, vector<1x4x16x128xf32>
    %4 = vector.shape_cast %3 : vector<1x4x16x128xf32> to vector<4x16x128xf32>
    %c0_4 = arith.constant 0 : index
    %c0_5 = arith.constant 0 : index
    %c0_6 = arith.constant 0 : index
    %5 = vector.load %arg4[%c0_4, %c0_5, %c0_6] : memref<1x16x128xi32, #tpu.memory_space<vmem>>, vector<1x16x128xi32>
    %6 = vector.shape_cast %5 : vector<1x16x128xi32> to vector<16x128xi32>
    %cst = arith.constant dense<0xFF800000> : vector<16x128xf32>
    %7 = vector.multi_reduction <maximumf>, %4, %cst [0] : vector<4x16x128xf32> to vector<16x128xf32>
    %8 = vector.shape_cast %7 : vector<16x128xf32> to vector<1x16x128xf32>
    %9 = vector.broadcast %8 : vector<1x16x128xf32> to vector<4x16x128xf32>
    %10 = arith.subf %4, %9 : vector<4x16x128xf32>
    %11 = math.exp %10 : vector<4x16x128xf32>
    %cst_7 = arith.constant dense<0.000000e+00> : vector<16x128xf32>
    %12 = vector.multi_reduction <add>, %11, %cst_7 [0] : vector<4x16x128xf32> to vector<16x128xf32>
    %13 = vector.shape_cast %12 : vector<16x128xf32> to vector<1x16x128xf32>
    %14 = tpu.reciprocal %13 : vector<1x16x128xf32> -> vector<1x16x128xf32>
    %15 = vector.broadcast %14 : vector<1x16x128xf32> to vector<4x16x128xf32>
    %16 = arith.mulf %11, %15 : vector<4x16x128xf32>
    %17 = vector.extract_strided_slice %16 {offsets = [1, 0, 0], sizes = [1, 16, 128], strides = [1, 1, 1]} : vector<4x16x128xf32> to vector<1x16x128xf32>
    %18 = vector.shape_cast %17 : vector<1x16x128xf32> to vector<16x128xf32>
    %c1_i32 = arith.constant 1 : i32
    %19 = vector.broadcast %c1_i32 : i32 to vector<16x128xi32>
    %20 = arith.cmpi eq, %6, %19 : vector<16x128xi32>
    %cst_8 = arith.constant 0.000000e+00 : f32
    %21 = vector.broadcast %cst_8 : f32 to vector<16x128xf32>
    %22 = arith.select %20, %18, %21 : vector<16x128xi1>, vector<16x128xf32>
    %cst_9 = arith.constant dense<0.000000e+00> : vector<128xf32>
    %23 = vector.multi_reduction <add>, %22, %cst_9 [0] : vector<16x128xf32> to vector<128xf32>
    %24 = vector.shape_cast %23 : vector<128xf32> to vector<1x128xf32>
    %cst_10 = arith.constant dense<0.000000e+00> : vector<128xf32>
    %25 = vector.multi_reduction <add>, %18, %cst_10 [0] : vector<16x128xf32> to vector<128xf32>
    %26 = vector.shape_cast %25 : vector<128xf32> to vector<1x128xf32>
    %27 = arith.extui %20 : vector<16x128xi1> to vector<16x128xi32>
    %28 = arith.sitofp %27 : vector<16x128xi32> to vector<16x128xf32>
    %cst_11 = arith.constant dense<0.000000e+00> : vector<128xf32>
    %29 = vector.multi_reduction <add>, %28, %cst_11 [0] : vector<16x128xf32> to vector<128xf32>
    %30 = vector.shape_cast %29 : vector<128xf32> to vector<1x128xf32>
    %31 = vector.extract_strided_slice %16 {offsets = [2, 0, 0], sizes = [1, 16, 128], strides = [1, 1, 1]} : vector<4x16x128xf32> to vector<1x16x128xf32>
    %32 = vector.shape_cast %31 : vector<1x16x128xf32> to vector<16x128xf32>
    %c2_i32 = arith.constant 2 : i32
    %33 = vector.broadcast %c2_i32 : i32 to vector<16x128xi32>
    %34 = arith.cmpi eq, %6, %33 : vector<16x128xi32>
    %cst_12 = arith.constant 0.000000e+00 : f32
    %35 = vector.broadcast %cst_12 : f32 to vector<16x128xf32>
    %36 = arith.select %34, %32, %35 : vector<16x128xi1>, vector<16x128xf32>
    %cst_13 = arith.constant dense<0.000000e+00> : vector<128xf32>
    %37 = vector.multi_reduction <add>, %36, %cst_13 [0] : vector<16x128xf32> to vector<128xf32>
    %38 = vector.shape_cast %37 : vector<128xf32> to vector<1x128xf32>
    %cst_14 = arith.constant dense<0.000000e+00> : vector<128xf32>
    %39 = vector.multi_reduction <add>, %32, %cst_14 [0] : vector<16x128xf32> to vector<128xf32>
    %40 = vector.shape_cast %39 : vector<128xf32> to vector<1x128xf32>
    %41 = arith.extui %34 : vector<16x128xi1> to vector<16x128xi32>
    %42 = arith.sitofp %41 : vector<16x128xi32> to vector<16x128xf32>
    %cst_15 = arith.constant dense<0.000000e+00> : vector<128xf32>
    %43 = vector.multi_reduction <add>, %42, %cst_15 [0] : vector<16x128xf32> to vector<128xf32>
    %44 = vector.shape_cast %43 : vector<128xf32> to vector<1x128xf32>
    %45 = vector.extract_strided_slice %16 {offsets = [3, 0, 0], sizes = [1, 16, 128], strides = [1, 1, 1]} : vector<4x16x128xf32> to vector<1x16x128xf32>
    %46 = vector.shape_cast %45 : vector<1x16x128xf32> to vector<16x128xf32>
    %c3_i32 = arith.constant 3 : i32
    %47 = vector.broadcast %c3_i32 : i32 to vector<16x128xi32>
    %48 = arith.cmpi eq, %6, %47 : vector<16x128xi32>
    %cst_16 = arith.constant 0.000000e+00 : f32
    %49 = vector.broadcast %cst_16 : f32 to vector<16x128xf32>
    %50 = arith.select %48, %46, %49 : vector<16x128xi1>, vector<16x128xf32>
    %cst_17 = arith.constant dense<0.000000e+00> : vector<128xf32>
    %51 = vector.multi_reduction <add>, %50, %cst_17 [0] : vector<16x128xf32> to vector<128xf32>
    %52 = vector.shape_cast %51 : vector<128xf32> to vector<1x128xf32>
    %cst_18 = arith.constant dense<0.000000e+00> : vector<128xf32>
    %53 = vector.multi_reduction <add>, %46, %cst_18 [0] : vector<16x128xf32> to vector<128xf32>
    %54 = vector.shape_cast %53 : vector<128xf32> to vector<1x128xf32>
    %55 = arith.extui %48 : vector<16x128xi1> to vector<16x128xi32>
    %56 = arith.sitofp %55 : vector<16x128xi32> to vector<16x128xf32>
    %cst_19 = arith.constant dense<0.000000e+00> : vector<128xf32>
    %57 = vector.multi_reduction <add>, %56, %cst_19 [0] : vector<16x128xf32> to vector<128xf32>
    %58 = vector.shape_cast %57 : vector<128xf32> to vector<1x128xf32>
    %59 = tpu.concatenate %24, %38, %52 in 0 : vector<1x128xf32>, vector<1x128xf32>, vector<1x128xf32> -> vector<3x128xf32>
    %60 = tpu.concatenate %26, %40, %54 in 0 : vector<1x128xf32>, vector<1x128xf32>, vector<1x128xf32> -> vector<3x128xf32>
    %61 = tpu.concatenate %30, %44, %58 in 0 : vector<1x128xf32>, vector<1x128xf32>, vector<1x128xf32> -> vector<3x128xf32>
    %62 = vector.shape_cast %59 : vector<3x128xf32> to vector<1x3x128xf32>
    %63 = vector.shape_cast %60 : vector<3x128xf32> to vector<1x3x128xf32>
    %64 = vector.shape_cast %61 : vector<3x128xf32> to vector<1x3x128xf32>
    %65 = tpu.concatenate %62, %63, %64 in 0 : vector<1x3x128xf32>, vector<1x3x128xf32>, vector<1x3x128xf32> -> vector<3x3x128xf32>
    %c0_20 = arith.constant 0 : index
    %c0_21 = arith.constant 0 : index
    %c0_22 = arith.constant 0 : index
    %66 = vector.load %arg6[%c0_20, %c0_21, %c0_22] : memref<3x3x128xf32, #tpu.memory_space<vmem>>, vector<3x3x128xf32>
    %67 = arith.addf %66, %65 : vector<3x3x128xf32>
    %c0_23 = arith.constant 0 : index
    %c0_24 = arith.constant 0 : index
    %c0_25 = arith.constant 0 : index
    %68 = vector.load %arg6[%c0_23, %c0_24, %c0_25] : memref<3x3x128xf32, #tpu.memory_space<vmem>>, vector<3x3x128xf32>
    tpu.vector_store %arg6[%c0_23, %c0_24, %c0_25], %67 {strides = array<i32>} : memref<3x3x128xf32, #tpu.memory_space<vmem>>, vector<3x3x128xf32>,
    %c0_i32_26 = arith.constant 0 : i32
    %69 = arith.cmpi eq, %arg2, %c0_i32_26 : i32
    %70 = arith.extui %69 : i1 to i32
    %c0_i32_27 = arith.constant 0 : i32
    %71 = arith.cmpi ne, %70, %c0_i32_27 : i32
    scf.if %71 {
      %c0_28 = arith.constant 0 : index
      %c0_29 = arith.constant 0 : index
      %c0_30 = arith.constant 0 : index
      %72 = vector.load %arg6[%c0_28, %c0_29, %c0_30] : memref<3x3x128xf32, #tpu.memory_space<vmem>>, vector<3x3x128xf32>
      %cst_31 = arith.constant dense<0.000000e+00> : vector<3x3xf32>
      %73 = vector.multi_reduction <add>, %72, %cst_31 [2] : vector<3x3x128xf32> to vector<3x3xf32>
      %c0_32 = arith.constant 0 : index
      %c0_33 = arith.constant 0 : index
      %c0_34 = arith.constant 0 : index
      %74 = vector.load %arg5[%c0_32, %c0_33, %c0_34] : memref<1x3x3xf32, #tpu.memory_space<vmem>>, vector<1x3x3xf32>
      %75 = vector.shape_cast %74 : vector<1x3x3xf32> to vector<3x3xf32>
      %76 = vector.shape_cast %73 : vector<3x3xf32> to vector<1x3x3xf32>
      tpu.vector_store %arg5[%c0_32, %c0_33, %c0_34], %76 {strides = array<i32>} : memref<1x3x3xf32, #tpu.memory_space<vmem>>, vector<1x3x3xf32>,
    } else {
    }
    return
  }
  func.func @transform_0(%arg0: i32, %arg1: i32, %arg2: i32) -> (i32, i32, i32, i32) {
    %c1_i32 = arith.constant 1 : i32
    %0 = arith.muli %arg1, %c1_i32 : i32
    %1 = arith.addi %0, %arg2 : i32
    %c0_i32 = arith.constant 0 : i32
    %c0_i32_0 = arith.constant 0 : i32
    %c0_i32_1 = arith.constant 0 : i32
    return %arg0, %c0_i32, %1, %c0_i32_0 : i32, i32, i32, i32
  }
  func.func @transform_1(%arg0: i32, %arg1: i32, %arg2: i32) -> (i32, i32, i32) {
    %c1_i32 = arith.constant 1 : i32
    %0 = arith.muli %arg1, %c1_i32 : i32
    %1 = arith.addi %0, %arg2 : i32
    %c0_i32 = arith.constant 0 : i32
    %c0_i32_0 = arith.constant 0 : i32
    return %arg0, %1, %c0_i32 : i32, i32, i32
  }
  func.func @transform_2(%arg0: i32, %arg1: i32, %arg2: i32) -> (i32, i32, i32) {
    %c1_i32 = arith.constant 1 : i32
    %0 = arith.muli %arg0, %c1_i32 : i32
    %1 = arith.addi %0, %arg1 : i32
    %c0_i32 = arith.constant 0 : i32
    %c0_i32_0 = arith.constant 0 : i32
    %c0_i32_1 = arith.constant 0 : i32
    return %1, %c0_i32, %c0_i32_0 : i32, i32, i32
  }
}

</mosaic_0001>

<llo_original>
// kernel: dice_loss_focal.1
$region0: #{dice_loss_focal.1}
  #allocation0 [shape = 'u32[]', space=smem, size = 0x4, offset = 0x4, fixed_abs, tag = 'smem constant byte address 0x4 - core index']
  #allocation1 [shape = 'u32[144,128]{1,0:T(1,128)}', space=vmem, size = 0x12000, scoped, tag = 'internal scratch']
  #allocation2 [shape = 'f32[3,3,128]{2,1,0:T(4,128)}', space=vmem, size = 0x1800, scoped, tag = 'scratch operand']
  %s0 = inlined_call_operand.vmem [shape: f32[2,4,16,128], index: 0, kind: input, shape index: {}]
  %s1 = inlined_call_operand.vmem [shape: s32[2,16,128], index: 1, kind: input, shape index: {}]
  %s2 = inlined_call_operand.vmem [shape: f32[2,3,3], index: 2, kind: output, shape index: {}]
  %s3 = sld [smem:[#allocation0]]
  $region49: #{dice_loss_focal.1} parent=0
    _
  %s5 = ssub.s32 1, %s3
  %s6 = scalar_select 0, %s5, %s3
  loop: start=0, step=1, limit=4
  $region2: #{dice_loss_focal.1} parent=0 // loop_pre_header
    _
  $region3: #{dice_loss_focal.1} parent=0 // loop_header
    %s8 = sphi 0, %s12
    %p9 = scmp.ge.s32.totalorder %s8, 4
    %s15 = sphi 0, %s34
    %s16 = sphi 0, %s30
    %s17 = sphi 0, %s26
    %s18 = sphi 0, %s15
    %s19 = sphi 0, %s16
    %s20 = sphi 0, %s17
    %s21 = sphi 0, %s18
    %s22 = sphi 0, %s19
    %s23 = sphi 0, %s20
    %s41 = sphi 0, %s43
    %s44 = sphi 0, %s41
    %s45 = sphi 0, %s44
    %s61 = sphi 0, %s45
    %s71 = sphi 0, %s73
    %s74 = sphi 0, %s71
    %s75 = sphi 0, %s74
    %s91 = sphi 0, %s75
    %s99 = sphi 0, %s101
    %s102 = sphi 0, %s99
    %s103 = sphi 0, %s102
    %s119 = sphi 0, %s103
  $region4: #{dice_loss_focal.1} parent=0 // loop_header_branch
    %11 = sbr.rel (%p9) target = $region8
  $region5: #{dice_loss_focal.1} parent=0 // loop_body
    %s13 = ssub.s32 %s8, 1
    %s14 = ssub.s32 %s8, 2
    %s24 = sadd.s32 1, %s17
    %p25 = scmp.ge.s32.totalorder %s24, 1
    %s26 = scalar_select %p25, 0, %s24
    %s27 = sadd.s32 1, %s16
    %s28 = scalar_select %p25, %s27, %s16
    %p29 = scmp.ge.s32.totalorder %s28, 1
    %s30 = scalar_select %p29, 0, %s28
    %s31 = sadd.s32 1, %s15
    %s32 = scalar_select %p29, %s31, %s15
    %p33 = scmp.ge.s32.totalorder %s32, 2
    %s34 = scalar_select %p33, 0, %s32
    %s35 = sadd.s32 %s16, %s17
    %s36 = sadd.s32 %s30, %s26
    %s37 = ssub.s32 %s15, %s34
    %s38 = ssub.s32 %s35, %s36
    %s39 = sor.u32 %s37, %s38
    %p40 = scmp.eq.s32.totalorder %s39, 0
    %s42 = sadd.s32 %s41, 1
    %s43 = scalar_select %p40, %s41, %s42
    %p46 = pneg %p40
    %p47 = scmp.eq.s32.totalorder %s8, 1
    %p48 = por %p46, %p47
    %p49 = scmp.ne.s32.totalorder %s41, %s44
    %p50 = scmp.eq.s32.totalorder %s8, 0
    %p51 = por %p49, %p50
    %p52 = scmp.ne.s32.totalorder %s41, %s44
    %p53 = scmp.eq.s32.totalorder %s13, 1
    %p54 = por %p52, %p53
    %p55 = scmp.ne.s32.totalorder %s44, %s45
    %p56 = scmp.eq.s32.totalorder %s13, 0
    %p57 = por %p55, %p56
    %p58 = scmp.ne.s32.totalorder %s44, %s45
    %p59 = scmp.eq.s32.totalorder %s14, 1
    %p60 = por %p58, %p59
    %p62 = scmp.ne.s32.totalorder %s45, %s61
    %p63 = scmp.eq.s32.totalorder %s14, 0
    %p64 = por %p62, %p63
    %s65 = sadd.s32 %s16, %s17
    %s66 = sadd.s32 %s30, %s26
    %s67 = ssub.s32 %s15, %s34
    %s68 = ssub.s32 %s65, %s66
    %s69 = sor.u32 %s67, %s68
    %p70 = scmp.eq.s32.totalorder %s69, 0
    %s72 = sadd.s32 %s71, 1
    %s73 = scalar_select %p70, %s71, %s72
    %p76 = pneg %p70
    %p77 = scmp.eq.s32.totalorder %s8, 1
    %p78 = por %p76, %p77
    %p79 = scmp.ne.s32.totalorder %s71, %s74
    %p80 = scmp.eq.s32.totalorder %s8, 0
    %p81 = por %p79, %p80
    %p82 = scmp.ne.s32.totalorder %s71, %s74
    %p83 = scmp.eq.s32.totalorder %s13, 1
    %p84 = por %p82, %p83
    %p85 = scmp.ne.s32.totalorder %s74, %s75
    %p86 = scmp.eq.s32.totalorder %s13, 0
    %p87 = por %p85, %p86
    %p88 = scmp.ne.s32.totalorder %s74, %s75
    %p89 = scmp.eq.s32.totalorder %s14, 1
    %p90 = por %p88, %p89
    %p92 = scmp.ne.s32.totalorder %s75, %s91
    %p93 = scmp.eq.s32.totalorder %s14, 0
    %p94 = por %p92, %p93
    %s95 = sadd.s32 %s15, %s16
    %s96 = sadd.s32 %s34, %s30
    %s97 = ssub.s32 %s95, %s96
    %p98 = scmp.eq.s32.totalorder %s97, 0
    %s100 = sadd.s32 %s99, 1
    %s101 = scalar_select %p98, %s99, %s100
    %p104 = pneg %p98
    %p105 = scmp.eq.s32.totalorder %s8, 1
    %p106 = por %p104, %p105
    %p107 = scmp.ne.s32.totalorder %s99, %s102
    %p108 = scmp.eq.s32.totalorder %s8, 0
    %p109 = por %p107, %p108
    %p110 = scmp.ne.s32.totalorder %s99, %s102
    %p111 = scmp.eq.s32.totalorder %s13, 1
    %p112 = por %p110, %p111
    %p113 = scmp.ne.s32.totalorder %s102, %s103
    %p114 = scmp.eq.s32.totalorder %s13, 0
    %p115 = por %p113, %p114
    %p116 = scmp.ne.s32.totalorder %s102, %s103
    %p117 = scmp.eq.s32.totalorder %s14, 1
    %p118 = por %p116, %p117
    %p120 = scmp.ne.s32.totalorder %s103, %s119
    %p121 = scmp.eq.s32.totalorder %s14, 0
    %p122 = por %p120, %p121
    %p123 = scmp.le.s32.totalorder 1, %s8
    %p124 = scmp.lt.s32.totalorder %s8, 3
    %p125 = pnand %p123, %p124
    %p126 = pneg %p125
    // Predicated region
    $region9: #{dice_loss_focal.1} parent=5 // pred_check
      _
    $region10: #{dice_loss_focal.1} parent=5 // pred_check_branch
      %128 = sbr.rel (%p125) target = $region12
    $region11: #{dice_loss_focal.1} parent=5 // pred_region
      %s129 = ssub.s32 %s8, 1
    $region12: #{dice_loss_focal.1} parent=5 // pred_fallthru
      _
    %p130 = scmp.lt.s32.totalorder %s8, 2
    // Predicated region
    $region13: #{dice_loss_focal.1} parent=5 // pred_check
      %p131 = pneg %p130
    $region14: #{dice_loss_focal.1} parent=5 // pred_check_branch
      %133 = sbr.rel (%p131) target = $region16
    $region15: #{dice_loss_focal.1} parent=5 // pred_region
      // Predicated region
      $region17: #{dice_loss_focal.1} parent=15 // pred_check
        %p134 = pneg %p51
      $region18: #{dice_loss_focal.1} parent=15 // pred_check_branch
        %136 = sbr.rel (%p134) target = $region20
      $region19: #{dice_loss_focal.1} parent=15 // pred_region
        %s137 = sadd.s32 %s16, %s17
        %s138 = smul.u32 2, %s137
        %p139 = scmp.lt.s32.totalorder %s15, 1
        %s140 = scalar_select %p139, %s15, 1
        %p141 = scmp.lt.s32.totalorder %s138, 1
        %s142 = scalar_select %p141, %s138, 1
        %s143 = smul.addr %s140, 8
        %s144 = sadd.s32 %s142, %s143
        %s145 = smul.addr %s144, 8
        %s146 = scalar_lea.vmem %s0, %s145
        %s147 = sadd.s32 %s16, %s17
        %s148 = smul.u32 2, %s147
      $region20: #{dice_loss_focal.1} parent=15 // pred_fallthru
        _
      // Predicated region
      $region21: #{dice_loss_focal.1} parent=15 // pred_check
        %p149 = pneg %p81
      $region22: #{dice_loss_focal.1} parent=15 // pred_check_branch
        %151 = sbr.rel (%p149) target = $region24
      $region23: #{dice_loss_focal.1} parent=15 // pred_region
        %s152 = sadd.s32 %s16, %s17
        %s153 = smul.u32 2, %s152
        %p154 = scmp.lt.s32.totalorder %s15, 1
        %s155 = scalar_select %p154, %s15, 1
        %p156 = scmp.lt.s32.totalorder %s153, 1
        %s157 = scalar_select %p156, %s153, 1
        %s158 = smul.addr %s155, 2
        %s159 = sadd.s32 %s157, %s158
        %s160 = smul.addr %s159, 8
        %s161 = scalar_lea.vmem %s1, %s160
        %s162 = sadd.s32 %s16, %s17
        %s163 = smul.u32 2, %s162
      $region24: #{dice_loss_focal.1} parent=15 // pred_fallthru
        _
    $region16: #{dice_loss_focal.1} parent=5 // pred_fallthru
      _
    %p164 = scmp.le.s32.totalorder 1, %s8
    %p165 = scmp.lt.s32.totalorder %s8, 3
    %p166 = pnand %p164, %p165
    %p167 = pneg %p166
    // Predicated region
    $region25: #{dice_loss_focal.1} parent=5 // pred_check
      _
    $region26: #{dice_loss_focal.1} parent=5 // pred_check_branch
      %169 = sbr.rel (%p166) target = $region28
    $region27: #{dice_loss_focal.1} parent=5 // pred_region
      %s170 = ssub.s32 %s8, 1
      %s171 = sadd.s32 %s19, %s20
      %s172 = smul.u32 2, %s171
      %p173 = scmp.lt.s32.totalorder %s18, 1
      %s174 = scalar_select %p173, %s18, 1
      %p175 = scmp.lt.s32.totalorder %s172, 1
      %s176 = scalar_select %p175, %s172, 1
      %s177 = smul.addr %s174, 8
      %s178 = sadd.s32 %s176, %s177
      %s179 = smul.addr %s178, 8
      %s180 = scalar_lea.vmem %s0, %s179
      %p181 = pneg %p57
      %p182 = pneg %p54
      %s183 = sadd.s32 %s19, %s20
      %s184 = smul.u32 2, %s183
      %p185 = scmp.lt.s32.totalorder %s18, 1
      %s186 = scalar_select %p185, %s18, 1
      %p187 = scmp.lt.s32.totalorder %s184, 1
      %s188 = scalar_select %p187, %s184, 1
      %s189 = smul.addr %s186, 2
      %s190 = sadd.s32 %s188, %s189
      %s191 = smul.addr %s190, 8
      %s192 = scalar_lea.vmem %s1, %s191
      %p193 = pneg %p87
      %p194 = pneg %p84
      %p195 = pneg %p115
      %p196 = pneg %p112
      %s197 = sadd.s32 %s18, %s19
      %p198 = scmp.lt.s32.totalorder %s197, 1
      %s199 = scalar_select %p198, %s197, 1
      %s200 = smul.addr %s199, 4
      %s201 = scalar_lea.vmem %s2, %s200
      %s202 = sadd.s32 %s19, %s20
      %s203 = smul.u32 2, %s202
      %p204 = scmp.lt.s32.totalorder %s18, 1
      %s205 = scalar_select %p204, %s18, 1
      %p206 = scmp.lt.s32.totalorder %s203, 1
      %s207 = scalar_select %p206, %s203, 1
      %s208 = smul.addr %s205, 8
      %s209 = sadd.s32 %s207, %s208
      %s210 = smul.addr %s209, 8
      %s211 = scalar_lea.vmem %s0, %s210
      %s212 = sadd.s32 %s19, %s20
      %s213 = smul.u32 2, %s212
      %s214 = sadd.s32 %s19, %s20
      %s215 = smul.u32 2, %s214
      %p216 = scmp.lt.s32.totalorder %s18, 1
      %s217 = scalar_select %p216, %s18, 1
      %p218 = scmp.lt.s32.totalorder %s215, 1
      %s219 = scalar_select %p218, %s215, 1
      %s220 = smul.addr %s217, 2
      %s221 = sadd.s32 %s219, %s220
      %s222 = smul.addr %s221, 8
      %s223 = scalar_lea.vmem %s1, %s222
      %s224 = sadd.s32 %s19, %s20
      %s225 = smul.u32 2, %s224
      %s226 = sadd.s32 %s18, %s19
      %p227 = scmp.lt.s32.totalorder %s226, 1
      %s228 = scalar_select %p227, %s226, 1
      %s229 = smul.addr %s228, 4
      %s230 = scalar_lea.vmem %s2, %s229
      %s231 = sadd.s32 %s18, %s19
      %p232 = scmp.eq.s32.totalorder %s20, 0
      // Predicated region
      $region29: #{dice_loss_focal.1} parent=27 // pred_check
        %p233 = pneg %p232
      $region30: #{dice_loss_focal.1} parent=27 // pred_check_branch
        %235 = sbr.rel (%p233) target = $region32
      $region31: #{dice_loss_focal.1} parent=27 // pred_region
        %236 = vst [vmem:[#allocation2] sm:$0x7] 0.0
        %237 = vst [vmem:[#allocation2 + $0x4] sm:$0x7] 0.0
        %238 = vst [vmem:[#allocation2 + $0x8] sm:$0x7] 0.0
      $region32: #{dice_loss_focal.1} parent=27 // pred_fallthru
        _
      %v239 = vld [vmem:[%s211] sm:$0xff]
      %v240 = vld [vmem:[%s211 + $0x8] sm:$0xff]
      %v241 = vld [vmem:[%s211 + $0x10] sm:$0xff]
      %v242 = vld [vmem:[%s211 + $0x18] sm:$0xff]
      %v243 = vld [vmem:[%s211 + $0x20] sm:$0xff]
      %v244 = vld [vmem:[%s211 + $0x28] sm:$0xff]
      %v245 = vld [vmem:[%s211 + $0x30] sm:$0xff]
      %v246 = vld [vmem:[%s211 + $0x38] sm:$0xff]
      %v247 = vld [vmem:[%s223] sm:$0xff]
      %v248 = vld [vmem:[%s223 + $0x8] sm:$0xff]
      %v249 = vmax.f32 %v239, %v243
      %v250 = vmax.f32 %v241, %v245
      %v251 = vmax.f32 %v249, %v250
      %v252 = vmax.f32 %v240, %v244
      %v253 = vmax.f32 %v242, %v246
      %v254 = vmax.f32 %v252, %v253
      %v255 = vsub.f32 %v239, %v251
      %v256 = vsub.f32 %v240, %v254
      %v257 = vsub.f32 %v241, %v251
      %v258 = vsub.f32 %v242, %v254
      %v259 = vsub.f32 %v243, %v251
      %v260 = vsub.f32 %v244, %v254
      %v261 = vsub.f32 %v245, %v251
      %v262 = vsub.f32 %v246, %v254
      %v263 = vmul.f32 %v255, 1.442695
      %v264 = vpow.pop %v263
      %v265 = vmul.f32 %v256, 1.442695
      %v266 = vpow.pop %v265
      %v267 = vmul.f32 %v257, 1.442695
      %v268 = vpow.pop %v267
      %v269 = vmul.f32 %v258, 1.442695
      %v270 = vpow.pop %v269
      %v271 = vmul.f32 %v259, 1.442695
      %v272 = vpow.pop %v271
      %v273 = vmul.f32 %v260, 1.442695
      %v274 = vpow.pop %v273
      %v275 = vmul.f32 %v261, 1.442695
      %v276 = vpow.pop %v275
      %v277 = vmul.f32 %v262, 1.442695
      %v278 = vpow.pop %v277
      %v279 = vadd.f32 %v264, %v268
      %v280 = vadd.f32 %v279, %v272
      %v281 = vadd.f32 %v280, %v276
      %v282 = vadd.f32 %v266, %v270
      %v283 = vadd.f32 %v282, %v274
      %v284 = vadd.f32 %v283, %v278
      %v285 = vrcp.pop %v281
      %v286 = vrcp.pop %v284
      %v287 = vmul.f32 %v268, %v285
      %v288 = vmul.f32 %v270, %v286
      %v289 = vmul.f32 %v272, %v285
      %v290 = vmul.f32 %v274, %v286
      %v291 = vmul.f32 %v276, %v285
      %v292 = vmul.f32 %v278, %v286
      %vm293 = vcmp.eq.s32.totalorder %v247, 1
      %vm294 = vcmp.eq.s32.totalorder %v248, 1
      %v295 = vsel %vm293, %v287, 0.0
      %v296 = vsel %vm294, %v288, 0.0
      %v297 = vadd.f32 %v295, %v296
      %v298 = vrot.slane %v297, 4
      %v299 = vadd.f32 %v297, %v298
      %v300 = vrot.slane %v299, 2
      %v301 = vadd.f32 %v299, %v300
      %v302 = vrot.slane %v301, 1
      %v303 = vadd.f32 %v301, %v302
      %v304 = vadd.f32 %v287, %v288
      %v305 = vrot.slane %v304, 4
      %v306 = vadd.f32 %v304, %v305
      %v307 = vrot.slane %v306, 2
      %v308 = vadd.f32 %v306, %v307
      %v309 = vrot.slane %v308, 1
      %v310 = vadd.f32 %v308, %v309
      %v311 = vsel %vm293, 1, 0
      %v312 = vsel %vm294, 1, 0
      %v313 = vcvt.s32.f32 %v311
      %v314 = vcvt.s32.f32 %v312
      %v315 = vadd.f32 %v313, %v314
      %v316 = vrot.slane %v315, 4
      %v317 = vadd.f32 %v315, %v316
      %v318 = vrot.slane %v317, 2
      %v319 = vadd.f32 %v317, %v318
      %v320 = vrot.slane %v319, 1
      %v321 = vadd.f32 %v319, %v320
      %vm322 = vcmp.eq.s32.totalorder %v247, 2
      %vm323 = vcmp.eq.s32.totalorder %v248, 2
      %v324 = vsel %vm322, %v289, 0.0
      %v325 = vsel %vm323, %v290, 0.0
      %v326 = vadd.f32 %v324, %v325
      %v327 = vrot.slane %v326, 4
      %v328 = vadd.f32 %v326, %v327
      %v329 = vrot.slane %v328, 2
      %v330 = vadd.f32 %v328, %v329
      %v331 = vrot.slane %v330, 1
      %v332 = vadd.f32 %v330, %v331
      %v333 = vadd.f32 %v289, %v290
      %v334 = vrot.slane %v333, 4
      %v335 = vadd.f32 %v333, %v334
      %v336 = vrot.slane %v335, 2
      %v337 = vadd.f32 %v335, %v336
      %v338 = vrot.slane %v337, 1
      %v339 = vadd.f32 %v337, %v338
      %v340 = vsel %vm322, 1, 0
      %v341 = vsel %vm323, 1, 0
      %v342 = vcvt.s32.f32 %v340
      %v343 = vcvt.s32.f32 %v341
      %v344 = vadd.f32 %v342, %v343
      %v345 = vrot.slane %v344, 4
      %v346 = vadd.f32 %v344, %v345
      %v347 = vrot.slane %v346, 2
      %v348 = vadd.f32 %v346, %v347
      %v349 = vrot.slane %v348, 1
      %v350 = vadd.f32 %v348, %v349
      %vm351 = vcmp.eq.s32.totalorder %v247, 3
      %vm352 = vcmp.eq.s32.totalorder %v248, 3
      %v353 = vsel %vm351, %v291, 0.0
      %v354 = vsel %vm352, %v292, 0.0
      %v355 = vadd.f32 %v353, %v354
      %v356 = vrot.slane %v355, 4
      %v357 = vadd.f32 %v355, %v356
      %v358 = vrot.slane %v357, 2
      %v359 = vadd.f32 %v357, %v358
      %v360 = vrot.slane %v359, 1
      %v361 = vadd.f32 %v359, %v360
      %v362 = vadd.f32 %v291, %v292
      %v363 = vrot.slane %v362, 4
      %v364 = vadd.f32 %v362, %v363
      %v365 = vrot.slane %v364, 2
      %v366 = vadd.f32 %v364, %v365
      %v367 = vrot.slane %v366, 1
      %v368 = vadd.f32 %v366, %v367
      %v369 = vsel %vm351, 1, 0
      %v370 = vsel %vm352, 1, 0
      %v371 = vcvt.s32.f32 %v369
      %v372 = vcvt.s32.f32 %v370
      %v373 = vadd.f32 %v371, %v372
      %v374 = vrot.slane %v373, 4
      %v375 = vadd.f32 %v373, %v374
      %v376 = vrot.slane %v375, 2
      %v377 = vadd.f32 %v375, %v376
      %v378 = vrot.slane %v377, 1
      %v379 = vadd.f32 %v377, %v378
      %vm380 = vcmask 1040384
      %v381 = vsel %vm380, %v303, %v332
      %vm382 = vcmask 1041408
      %v383 = vsel %vm382, %v381, %v361
      %v384 = vsel %vm380, %v310, %v339
      %v385 = vsel %vm382, %v384, %v368
      %v386 = vsel %vm380, %v321, %v350
      %v387 = vsel %vm382, %v386, %v379
      %v388 = vld [vmem:[#allocation2] sm:$0x7]
      %v389 = vld [vmem:[#allocation2 + $0x4] sm:$0x7]
      %v390 = vld [vmem:[#allocation2 + $0x8] sm:$0x7]
      %v391 = vadd.f32 %v388, %v383
      %v392 = vadd.f32 %v389, %v385
      %v393 = vadd.f32 %v390, %v387
      %394 = vst [vmem:[#allocation2] sm:$0x7] %v391
      %395 = vst [vmem:[#allocation2 + $0x4] sm:$0x7] %v392
      %396 = vst [vmem:[#allocation2 + $0x8] sm:$0x7] %v393
      // Predicated region
      $region33: #{dice_loss_focal.1} parent=27 // pred_check
        %p397 = pneg %p232
      $region34: #{dice_loss_focal.1} parent=27 // pred_check_branch
        %399 = sbr.rel (%p397) target = $region36
      $region35: #{dice_loss_focal.1} parent=27 // pred_region
        %v400 = vld [vmem:[#allocation2] sm:$0x7]
        %v401 = vld [vmem:[#allocation2 + $0x4] sm:$0x7]
        %v402 = vld [vmem:[#allocation2 + $0x8] sm:$0x7]
        %vm403 = vcmask 1042432
        %v404 = vsel %vm403, %v400, 0.0
        %405 = vadd.xlane.f32.xlu0 %v404
        %v406 = vpop.xlane.xlu0 %405
        %v407 = vsel %vm403, %v401, 0.0
        %408 = vadd.xlane.f32.xlu0 %v407
        %v409 = vpop.xlane.xlu0 %408
        %v410 = vsel %vm403, %v402, 0.0
        %411 = vadd.xlane.f32.xlu0 %v410
        %v412 = vpop.xlane.xlu0 %411
        %v416 = vlaneseq
        %v417 = vand.u32 %v416, 127
        %v418 = vlaneseq
        %v419 = vshrl.u32 %v418, 7
        %v420 = vsub.s32 %v417, %v419
        %v421 = vrot.slane %v406, %v420
        %v422 = vlaneseq
        %v423 = vshrl.u32 %v422, 7
        %v424 = vsub.s32 %v417, %v423
        %v425 = vrot.slane %v409, %v424
        %v426 = vlaneseq
        %v427 = vshrl.u32 %v426, 7
        %v428 = vsub.s32 %v417, %v427
        %v429 = vrot.slane %v412, %v428
        %vm430 = vcmask 1041409
        %v431 = vsel %vm430, %v425, %v421
        %vm432 = vcmask 1042434
        %v433 = vsel %vm432, %v429, %v431
        %vm435 = vcmask 18432
        %436 = vst.msk [vmem:[%s230] sm:$0x7] %vm435, %v433
      $region36: #{dice_loss_focal.1} parent=27 // pred_fallthru
        _
      %s437 = sadd.s32 %s18, %s19
      %p438 = scmp.lt.s32.totalorder %s437, 1
      %s439 = scalar_select %p438, %s437, 1
      %s440 = smul.addr %s439, 4
      %s441 = scalar_lea.vmem %s2, %s440
      // Predicated region
      $region37: #{dice_loss_focal.1} parent=27 // pred_check
        %p442 = pneg %p112
      $region38: #{dice_loss_focal.1} parent=27 // pred_check_branch
        %444 = sbr.rel (%p442) target = $region40
      $region39: #{dice_loss_focal.1} parent=27 // pred_region
        %s445 = sadd.s32 %s18, %s19
      $region40: #{dice_loss_focal.1} parent=27 // pred_fallthru
        _
    $region28: #{dice_loss_focal.1} parent=5 // pred_fallthru
      _
    %p446 = scmp.le.s32.totalorder 2, %s8
    // Predicated region
    $region41: #{dice_loss_focal.1} parent=5 // pred_check
      %p447 = pneg %p446
    $region42: #{dice_loss_focal.1} parent=5 // pred_check_branch
      %449 = sbr.rel (%p447) target = $region44
    $region43: #{dice_loss_focal.1} parent=5 // pred_region
      %s450 = ssub.s32 %s8, 2
      // Predicated region
      $region45: #{dice_loss_focal.1} parent=43 // pred_check
        %p451 = pneg %p118
      $region46: #{dice_loss_focal.1} parent=43 // pred_check_branch
        %453 = sbr.rel (%p451) target = $region48
      $region47: #{dice_loss_focal.1} parent=43 // pred_region
        %s454 = sadd.s32 %s21, %s22
        %p455 = scmp.lt.s32.totalorder %s454, 1
        %s456 = scalar_select %p455, %s454, 1
        %s457 = smul.addr %s456, 4
        %s458 = scalar_lea.vmem %s2, %s457
      $region48: #{dice_loss_focal.1} parent=43 // pred_fallthru
        _
    $region44: #{dice_loss_focal.1} parent=5 // pred_fallthru
      _
  $region6: #{dice_loss_focal.1} parent=0 // loop_footer
    %s12 = sadd.s32 1, %s8
  $region7: #{dice_loss_focal.1} parent=0 // loop_footer_branch
    %7 = sbr.rel target = $region3
  $region8: #{dice_loss_focal.1} parent=0 // loop_exit
    _

</llo_original>
